<compile_context>
chip_gen: v5e
topology: v5e:2x2
jax: 0.10.0
libtpu: 0.0.40
codegen_flags: <defaults>
</compile_context>

<pallas_src>
import functools
import math

import jax
import jax.numpy as jnp
from jax.experimental import pallas as pl
from jax.experimental.pallas import tpu as pltpu

IN_FEATURES = 8
OUT_FEATURES = 8
H1, H2, H3 = 128, 256, 256


def _round_up(x, m):
    return (x + m - 1) // m * m


def _cdiv(a, b):
    return -(-a // b)


def qnet_kernel(x_ref, w1_ref, b1_ref, w2_ref, b2_ref,
                w3_ref, b3_ref, w4_ref, b4_ref, o_ref):
    # bf16 operands everywhere, f32 MXU accumulation; biases added in f32.
    x = x_ref[...].astype(jnp.bfloat16)                       # (tm, 8)
    h = jnp.dot(x, w1_ref[...], preferred_element_type=jnp.float32)
    h = jnp.maximum(h + b1_ref[...], 0.0).astype(jnp.bfloat16)
    h = jnp.dot(h, w2_ref[...], preferred_element_type=jnp.float32)
    h = jnp.maximum(h + b2_ref[...], 0.0).astype(jnp.bfloat16)
    h = jnp.dot(h, w3_ref[...], preferred_element_type=jnp.float32)
    h = jnp.maximum(h + b3_ref[...], 0.0).astype(jnp.bfloat16)
    h = jnp.dot(h, w4_ref[...], preferred_element_type=jnp.float32)  # (tm, 8)
    o_ref[...] = (h + b4_ref[...]).astype(o_ref.dtype)


def _choose_tiling(B, block_m):
    """Balanced batch tiling: minimal over-padding, >=2 steps for big batches."""
    n_steps = _cdiv(B, block_m)
    if B > 256:
        n_steps = max(n_steps, 2)   # keep both v7x TensorCores busy
    tm = _round_up(_cdiv(B, n_steps), 16)   # 16-row granularity (bf16 sublanes)
    tm = min(tm, 4096)                       # VMEM safety cap (v7x: 64 MiB/TC)
    n_steps = _cdiv(B, tm)
    b_pad = n_steps * tm
    return tm, b_pad, n_steps


def _vmem_limit_bytes():
    try:
        cap = int(pltpu.get_tpu_info().vmem_capacity_bytes)
        return max(32 * 1024 * 1024, min(cap * 3 // 4, 96 * 1024 * 1024))
    except Exception:
        return 48 * 1024 * 1024   # safe on v7x (64 MiB physical) and larger chips


@functools.partial(jax.jit, static_argnames=("block_m",))
def qnet_forward(x, packed, *, block_m=2048):
    """x: (B, 8) float32.  packed: dict from pack_params().  Returns (B, 8) f32."""
    B = x.shape[0]
    tm, b_pad, n_steps = _choose_tiling(B, block_m)

    if b_pad != B:
        x = jnp.pad(x, ((0, b_pad - B), (0, 0)))   # batch pad only; features stay 8

    w1, b1 = packed["w1"], packed["b1"]
    w2, b2 = packed["w2"], packed["b2"]
    w3, b3 = packed["w3"], packed["b3"]
    w4, b4 = packed["w4"], packed["b4"]

    resident = lambda shape: pl.BlockSpec(shape, lambda i: (0, 0))  # DMA'd once

    weight_bytes = sum(int(v.size) * v.dtype.itemsize for v in packed.values())
    cost = pl.CostEstimate(
        flops=2 * b_pad * (IN_FEATURES * H1 + H1 * H2 + H2 * H3 + H3 * OUT_FEATURES),
        transcendentals=0,
        bytes_accessed=b_pad * IN_FEATURES * 4 + b_pad * OUT_FEATURES * 4 + weight_bytes,
    )

    out = pl.pallas_call(
        qnet_kernel,
        out_shape=jax.ShapeDtypeStruct((b_pad, OUT_FEATURES), jnp.float32),
        grid=(n_steps,),
        in_specs=[
            pl.BlockSpec((tm, IN_FEATURES), lambda i: (i, 0)),   # x: tiled over batch
            resident((IN_FEATURES, H1)),  resident((1, H1)),
            resident((H1, H2)),           resident((1, H2)),
            resident((H2, H3)),           resident((1, H3)),
            resident((H3, OUT_FEATURES)), resident((1, OUT_FEATURES)),
        ],
        out_specs=pl.BlockSpec((tm, OUT_FEATURES), lambda i: (i, 0)),
        compiler_params=pltpu.CompilerParams(
            dimension_semantics=("parallel",),
            vmem_limit_bytes=_vmem_limit_bytes(),
        ),
        cost_estimate=cost,
    )(x, w1, b1, w2, b2, w3, b3, w4, b4)

    return out[:B]


def init_params(key):
    """Logical f32 params mimicking torch.nn.Linear init: U(-1/sqrt(fan_in), +)."""
    sizes = [(IN_FEATURES, H1), (H1, H2), (H2, H3), (H3, OUT_FEATURES)]
    params = {}
    for i, (fan_in, fan_out) in enumerate(sizes, start=1):
        key, kw, kb = jax.random.split(key, 3)
        bound = 1.0 / math.sqrt(fan_in)
        # stored as [in, out] so forward computes x @ W (== torch x @ W.T)
        params[f"w{i}"] = jax.random.uniform(
            kw, (fan_in, fan_out), jnp.float32, -bound, bound)
        params[f"b{i}"] = jax.random.uniform(
            kb, (fan_out,), jnp.float32, -bound, bound)
    return params


def pack_params(params):
    """Weights bf16 (natural shapes, no padding), biases f32 as (1, N) rows."""
    packed = {}
    for i in range(1, 5):
        packed[f"w{i}"] = params[f"w{i}"].astype(jnp.bfloat16)
        packed[f"b{i}"] = params[f"b{i}"].reshape(1, -1).astype(jnp.float32)
    return packed


def qnet_reference_f32(x, params):
    """Pure-f32 reference matching the PyTorch module exactly."""
    h = jnp.maximum(x @ params["w1"] + params["b1"], 0.0)
    h = jnp.maximum(h @ params["w2"] + params["b2"], 0.0)
    h = jnp.maximum(h @ params["w3"] + params["b3"], 0.0)
    return h @ params["w4"] + params["b4"]


def qnet_reference_bf16(x, params):
    """Mirrors the kernel's bf16-operand / f32-accumulate math in plain JAX."""
    def layer(h, w, b, relu):
        h = jnp.dot(h.astype(jnp.bfloat16), w.astype(jnp.bfloat16),
                    preferred_element_type=jnp.float32) + b
        return jnp.maximum(h, 0.0) if relu else h
    h = layer(x, params["w1"], params["b1"], True)
    h = layer(h, params["w2"], params["b2"], True)
    h = layer(h, params["w3"], params["b3"], True)
    return layer(h, params["w4"], params["b4"], False)


def _check(out, x, params):
    ref_bf16 = qnet_reference_bf16(x, params)
    assert jnp.allclose(out, ref_bf16, atol=2e-3, rtol=2e-3), (
        float(jnp.max(jnp.abs(out - ref_bf16))))
    ref_f32 = qnet_reference_f32(x, params)
    assert jnp.allclose(out, ref_f32, atol=3e-2, rtol=3e-2), (
        float(jnp.max(jnp.abs(out - ref_f32))))


if __name__ == "__main__":
    key = jax.random.PRNGKey(0)
    kp, kx1, kx2 = jax.random.split(key, 3)
    params = init_params(kp)
    packed = pack_params(params)

    # Small demo batch: single grid step.
    B1 = 16
    x1 = jax.random.normal(kx1, (B1, IN_FEATURES), jnp.float32)
    out1 = jax.block_until_ready(qnet_forward(x1, packed))
    assert out1.shape == (B1, OUT_FEATURES)
    _check(out1, x1, params)

    # Ragged batch: exercises batch padding and the 2-step parallel grid.
    B2 = 300
    x2 = jax.random.normal(kx2, (B2, IN_FEATURES), jnp.float32)
    out2 = jax.block_until_ready(qnet_forward(x2, packed))
    assert out2.shape == (B2, OUT_FEATURES)
    _check(out2, x2, params)

    print("KERNEL_OK")
</pallas_src>

<mosaic_0001>
module attributes {stable_mosaic.version = 11 : i64} {
  func.func @qnet_kernel(%arg0: i32, %arg1: memref<16x8xf32, #tpu.memory_space<vmem>>, %arg2: memref<8x128xbf16, #tpu.memory_space<vmem>>, %arg3: memref<1x128xf32, #tpu.memory_space<vmem>>, %arg4: memref<128x256xbf16, #tpu.memory_space<vmem>>, %arg5: memref<1x256xf32, #tpu.memory_space<vmem>>, %arg6: memref<256x256xbf16, #tpu.memory_space<vmem>>, %arg7: memref<1x256xf32, #tpu.memory_space<vmem>>, %arg8: memref<256x8xbf16, #tpu.memory_space<vmem>>, %arg9: memref<1x8xf32, #tpu.memory_space<vmem>>, %arg10: memref<16x8xf32, #tpu.memory_space<vmem>>) attributes {dimension_semantics = [#tpu.dimension_semantics<parallel>], iteration_bounds = array<i64: 1>, scalar_prefetch = 0 : i64, scratch_operands = 0 : i64, tpu.core_type = #tpu.core_type<tc>, window_params = [{transform_indices = @transform_0, window_bounds = array<i64: 16, 8>}, {pipeline_mode = #tpu.pipeline_mode<synchronous>, transform_indices = @transform_1, window_bounds = array<i64: 8, 128>}, {pipeline_mode = #tpu.pipeline_mode<synchronous>, transform_indices = @transform_2, window_bounds = array<i64: 1, 128>}, {pipeline_mode = #tpu.pipeline_mode<synchronous>, transform_indices = @transform_3, window_bounds = array<i64: 128, 256>}, {pipeline_mode = #tpu.pipeline_mode<synchronous>, transform_indices = @transform_4, window_bounds = array<i64: 1, 256>}, {pipeline_mode = #tpu.pipeline_mode<synchronous>, transform_indices = @transform_5, window_bounds = array<i64: 256, 256>}, {pipeline_mode = #tpu.pipeline_mode<synchronous>, transform_indices = @transform_6, window_bounds = array<i64: 1, 256>}, {pipeline_mode = #tpu.pipeline_mode<synchronous>, transform_indices = @transform_7, window_bounds = array<i64: 256, 8>}, {pipeline_mode = #tpu.pipeline_mode<synchronous>, transform_indices = @transform_8, window_bounds = array<i64: 1, 8>}, {transform_indices = @transform_9, window_bounds = array<i64: 16, 8>}]} {
    %c0 = arith.constant 0 : index
    %c0_0 = arith.constant 0 : index
    %0 = vector.load %arg1[%c0, %c0_0] : memref<16x8xf32, #tpu.memory_space<vmem>>, vector<16x8xf32>
    %1 = arith.truncf %0 : vector<16x8xf32> to vector<16x8xbf16>
    %c0_1 = arith.constant 0 : index
    %c0_2 = arith.constant 0 : index
    %2 = vector.load %arg2[%c0_1, %c0_2] : memref<8x128xbf16, #tpu.memory_space<vmem>>, vector<8x128xbf16>
    %cst = arith.constant dense<0.000000e+00> : vector<16x128xf32>
    %3 = tpu.matmul %1, %2, %cst {dimension_numbers = #tpu.dot_dimension_numbers<[1], [0], [0], [1], [0, 0, 1, 1], [], []>} : vector<16x8xbf16>, vector<8x128xbf16>, vector<16x128xf32> -> vector<16x128xf32>
    %c0_3 = arith.constant 0 : index
    %c0_4 = arith.constant 0 : index
    %4 = vector.load %arg3[%c0_3, %c0_4] : memref<1x128xf32, #tpu.memory_space<vmem>>, vector<1x128xf32>
    %5 = vector.broadcast %4 : vector<1x128xf32> to vector<16x128xf32>
    %6 = arith.addf %3, %5 : vector<16x128xf32>
    %cst_5 = arith.constant 0.000000e+00 : f32
    %7 = vector.broadcast %cst_5 : f32 to vector<16x128xf32>
    %8 = arith.maximumf %6, %7 : vector<16x128xf32>
    %9 = arith.truncf %8 : vector<16x128xf32> to vector<16x128xbf16>
    %c0_6 = arith.constant 0 : index
    %c0_7 = arith.constant 0 : index
    %10 = vector.load %arg4[%c0_6, %c0_7] : memref<128x256xbf16, #tpu.memory_space<vmem>>, vector<128x256xbf16>
    %cst_8 = arith.constant dense<0.000000e+00> : vector<16x256xf32>
    %11 = tpu.matmul %9, %10, %cst_8 {dimension_numbers = #tpu.dot_dimension_numbers<[1], [0], [0], [1], [0, 0, 1, 1], [], []>} : vector<16x128xbf16>, vector<128x256xbf16>, vector<16x256xf32> -> vector<16x256xf32>
    %c0_9 = arith.constant 0 : index
    %c0_10 = arith.constant 0 : index
    %12 = vector.load %arg5[%c0_9, %c0_10] : memref<1x256xf32, #tpu.memory_space<vmem>>, vector<1x256xf32>
    %13 = vector.broadcast %12 : vector<1x256xf32> to vector<16x256xf32>
    %14 = arith.addf %11, %13 : vector<16x256xf32>
    %cst_11 = arith.constant 0.000000e+00 : f32
    %15 = vector.broadcast %cst_11 : f32 to vector<16x256xf32>
    %16 = arith.maximumf %14, %15 : vector<16x256xf32>
    %17 = arith.truncf %16 : vector<16x256xf32> to vector<16x256xbf16>
    %c0_12 = arith.constant 0 : index
    %c0_13 = arith.constant 0 : index
    %18 = vector.load %arg6[%c0_12, %c0_13] : memref<256x256xbf16, #tpu.memory_space<vmem>>, vector<256x256xbf16>
    %cst_14 = arith.constant dense<0.000000e+00> : vector<16x256xf32>
    %19 = tpu.matmul %17, %18, %cst_14 {dimension_numbers = #tpu.dot_dimension_numbers<[1], [0], [0], [1], [0, 0, 1, 1], [], []>} : vector<16x256xbf16>, vector<256x256xbf16>, vector<16x256xf32> -> vector<16x256xf32>
    %c0_15 = arith.constant 0 : index
    %c0_16 = arith.constant 0 : index
    %20 = vector.load %arg7[%c0_15, %c0_16] : memref<1x256xf32, #tpu.memory_space<vmem>>, vector<1x256xf32>
    %21 = vector.broadcast %20 : vector<1x256xf32> to vector<16x256xf32>
    %22 = arith.addf %19, %21 : vector<16x256xf32>
    %cst_17 = arith.constant 0.000000e+00 : f32
    %23 = vector.broadcast %cst_17 : f32 to vector<16x256xf32>
    %24 = arith.maximumf %22, %23 : vector<16x256xf32>
    %25 = arith.truncf %24 : vector<16x256xf32> to vector<16x256xbf16>
    %c0_18 = arith.constant 0 : index
    %c0_19 = arith.constant 0 : index
    %26 = vector.load %arg8[%c0_18, %c0_19] : memref<256x8xbf16, #tpu.memory_space<vmem>>, vector<256x8xbf16>
    %cst_20 = arith.constant dense<0.000000e+00> : vector<16x8xf32>
    %27 = tpu.matmul %25, %26, %cst_20 {dimension_numbers = #tpu.dot_dimension_numbers<[1], [0], [0], [1], [0, 0, 1, 1], [], []>} : vector<16x256xbf16>, vector<256x8xbf16>, vector<16x8xf32> -> vector<16x8xf32>
    %c0_21 = arith.constant 0 : index
    %c0_22 = arith.constant 0 : index
    %28 = vector.load %arg9[%c0_21, %c0_22] : memref<1x8xf32, #tpu.memory_space<vmem>>, vector<1x8xf32>
    %29 = vector.broadcast %28 : vector<1x8xf32> to vector<16x8xf32>
    %30 = arith.addf %27, %29 : vector<16x8xf32>
    %c0_23 = arith.constant 0 : index
    %c0_24 = arith.constant 0 : index
    %31 = vector.load %arg10[%c0_23, %c0_24] : memref<16x8xf32, #tpu.memory_space<vmem>>, vector<16x8xf32>
    tpu.vector_store %arg10[%c0_23, %c0_24], %30 {strides = array<i32>} : memref<16x8xf32, #tpu.memory_space<vmem>>, vector<16x8xf32>,
    return
  }
  func.func @transform_0(%arg0: i32) -> (i32, i32) {
    %c0_i32 = arith.constant 0 : i32
    %c0_i32_0 = arith.constant 0 : i32
    return %arg0, %c0_i32 : i32, i32
  }
  func.func @transform_1(%arg0: i32) -> (i32, i32) {
    %c0_i32 = arith.constant 0 : i32
    %c0_i32_0 = arith.constant 0 : i32
    %c0_i32_1 = arith.constant 0 : i32
    return %c0_i32, %c0_i32_0 : i32, i32
  }
  func.func @transform_2(%arg0: i32) -> (i32, i32) {
    %c0_i32 = arith.constant 0 : i32
    %c0_i32_0 = arith.constant 0 : i32
    %c0_i32_1 = arith.constant 0 : i32
    return %c0_i32, %c0_i32_0 : i32, i32
  }
  func.func @transform_3(%arg0: i32) -> (i32, i32) {
    %c0_i32 = arith.constant 0 : i32
    %c0_i32_0 = arith.constant 0 : i32
    %c0_i32_1 = arith.constant 0 : i32
    return %c0_i32, %c0_i32_0 : i32, i32
  }
  func.func @transform_4(%arg0: i32) -> (i32, i32) {
    %c0_i32 = arith.constant 0 : i32
    %c0_i32_0 = arith.constant 0 : i32
    %c0_i32_1 = arith.constant 0 : i32
    return %c0_i32, %c0_i32_0 : i32, i32
  }
  func.func @transform_5(%arg0: i32) -> (i32, i32) {
    %c0_i32 = arith.constant 0 : i32
    %c0_i32_0 = arith.constant 0 : i32
    %c0_i32_1 = arith.constant 0 : i32
    return %c0_i32, %c0_i32_0 : i32, i32
  }
  func.func @transform_6(%arg0: i32) -> (i32, i32) {
    %c0_i32 = arith.constant 0 : i32
    %c0_i32_0 = arith.constant 0 : i32
    %c0_i32_1 = arith.constant 0 : i32
    return %c0_i32, %c0_i32_0 : i32, i32
  }
  func.func @transform_7(%arg0: i32) -> (i32, i32) {
    %c0_i32 = arith.constant 0 : i32
    %c0_i32_0 = arith.constant 0 : i32
    %c0_i32_1 = arith.constant 0 : i32
    return %c0_i32, %c0_i32_0 : i32, i32
  }
  func.func @transform_8(%arg0: i32) -> (i32, i32) {
    %c0_i32 = arith.constant 0 : i32
    %c0_i32_0 = arith.constant 0 : i32
    %c0_i32_1 = arith.constant 0 : i32
    return %c0_i32, %c0_i32_0 : i32, i32
  }
  func.func @transform_9(%arg0: i32) -> (i32, i32) {
    %c0_i32 = arith.constant 0 : i32
    %c0_i32_0 = arith.constant 0 : i32
    return %arg0, %c0_i32 : i32, i32
  }
}

</mosaic_0001>

<llo_original>
// kernel: qnet_forward.1
$region0: #{qnet_forward.1}
  #allocation0 [shape = 'u32[]', space=smem, size = 0x4, offset = 0x4, fixed_abs, tag = 'smem constant byte address 0x4 - core index']
  #allocation1 [shape = 'u32[72,128]{1,0:T(1,128)}', space=vmem, size = 0x9000, scoped, tag = 'internal scratch']
  %s0 = inlined_call_operand.vmem [shape: f32[16,8], index: 0, kind: input, shape index: {}]
  %s1 = inlined_call_operand.vmem [shape: bf16[8,128], index: 1, kind: input, shape index: {}]
  %s2 = inlined_call_operand.vmem [shape: f32[1,128], index: 2, kind: input, shape index: {}]
  %s3 = inlined_call_operand.vmem [shape: bf16[128,256], index: 3, kind: input, shape index: {}]
  %s4 = inlined_call_operand.vmem [shape: f32[1,256], index: 4, kind: input, shape index: {}]
  %s5 = inlined_call_operand.hbm [shape: bf16[256,256], index: 5, kind: input, shape index: {}]
  %s6 = inlined_call_operand.vmem [shape: f32[1,256], index: 6, kind: input, shape index: {}]
  %s7 = inlined_call_operand.vmem [shape: bf16[256,8], index: 7, kind: input, shape index: {}]
  %s8 = inlined_call_operand.vmem [shape: f32[1,8], index: 8, kind: input, shape index: {}]
  %s9 = inlined_call_operand.vmem [shape: f32[16,8], index: 9, kind: output, shape index: {}]
  %s10 = sld [smem:[#allocation0]]
  $region50: #{qnet_forward.1} parent=0
    _
  %s12 = ssub.s32 1, %s10
  %s13 = scalar_select 0, %s12, %s10
  $region1: #{qnet_forward.1} parent=0
    #allocation2 [shape = 'u8[131072]{0}', space=vmem, size = 0x20000, scoped, tag = 'input window, operand 5, single buffered']
    #allocation3 [shape = 's32[1]{0}', space=sflag, size = 0x4, scoped, tag = 'scoped memory for qnet_forward.1']
    %14 = vsyncpa [#allocation3], 0
    // Predicated region
    $region2: #{qnet_forward.1} parent=1 // pred_check
      _
    $region3: #{qnet_forward.1} parent=1 // pred_check_branch
      %16 = sbr.rel (0) target = $region5
    $region4: #{qnet_forward.1} parent=1 // pred_region
      _
    $region5: #{qnet_forward.1} parent=1 // pred_fallthru
      _
    // Predicated region
    $region6: #{qnet_forward.1} parent=1 // pred_check
      _
    $region7: #{qnet_forward.1} parent=1 // pred_check_branch
      %18 = sbr.rel (0) target = $region9
    $region8: #{qnet_forward.1} parent=1 // pred_region
      _
    $region9: #{qnet_forward.1} parent=1 // pred_fallthru
      _
    // Predicated region
    $region10: #{qnet_forward.1} parent=1 // pred_check
      _
    $region11: #{qnet_forward.1} parent=1 // pred_check_branch
      %20 = sbr.rel (0) target = $region13
    $region12: #{qnet_forward.1} parent=1 // pred_region
      _
    $region13: #{qnet_forward.1} parent=1 // pred_fallthru
      _
    // Predicated region
    $region14: #{qnet_forward.1} parent=1 // pred_check
      _
    $region15: #{qnet_forward.1} parent=1 // pred_check_branch
      %22 = sbr.rel (0) target = $region17
    $region16: #{qnet_forward.1} parent=1 // pred_region
      _
    $region17: #{qnet_forward.1} parent=1 // pred_fallthru
      _
    // Predicated region
    $region18: #{qnet_forward.1} parent=1 // pred_check
      _
    $region19: #{qnet_forward.1} parent=1 // pred_check_branch
      %24 = sbr.rel (0) target = $region21
    $region20: #{qnet_forward.1} parent=1 // pred_region
      _
    $region21: #{qnet_forward.1} parent=1 // pred_fallthru
      _
    // Predicated region
    $region22: #{qnet_forward.1} parent=1 // pred_check
      _
    $region23: #{qnet_forward.1} parent=1 // pred_check_branch
      %26 = sbr.rel (0) target = $region25
    $region24: #{qnet_forward.1} parent=1 // pred_region
      %28 = vsyncadd [#allocation3], 0
      %s29 = sshll.u32 %s5, 4
      %s30 = int_to_ptr.hbm [resolvable:$true] %s29
      %s31 = sshll.u32 [#allocation2], 4
      %s32 = int_to_ptr.vmem [resolvable:$true] %s31
      %37 = dma.hbm_to_vmem [thread:$0]  %s30, 4096, %s32, [#allocation3], 128, 128, 8
    $region25: #{qnet_forward.1} parent=1 // pred_fallthru
      _
    // Predicated region
    $region26: #{qnet_forward.1} parent=1 // pred_check
      _
    $region27: #{qnet_forward.1} parent=1 // pred_check_branch
      %39 = sbr.rel (0) target = $region29
    $region28: #{qnet_forward.1} parent=1 // pred_region
      _
    $region29: #{qnet_forward.1} parent=1 // pred_fallthru
      _
    // Predicated region
    $region30: #{qnet_forward.1} parent=1 // pred_check
      _
    $region31: #{qnet_forward.1} parent=1 // pred_check_branch
      %41 = sbr.rel (0) target = $region33
    $region32: #{qnet_forward.1} parent=1 // pred_region
      _
    $region33: #{qnet_forward.1} parent=1 // pred_fallthru
      _
    // Predicated region
    $region34: #{qnet_forward.1} parent=1 // pred_check
      _
    $region35: #{qnet_forward.1} parent=1 // pred_check_branch
      %43 = sbr.rel (0) target = $region37
    $region36: #{qnet_forward.1} parent=1 // pred_region
      _
    $region37: #{qnet_forward.1} parent=1 // pred_fallthru
      _
    // Predicated region
    $region38: #{qnet_forward.1} parent=1 // pred_check
      _
    $region39: #{qnet_forward.1} parent=1 // pred_check_branch
      %45 = sbr.rel (0) target = $region41
    $region40: #{qnet_forward.1} parent=1 // pred_region
      %47 = dma.done [#allocation3], 4096
    $region41: #{qnet_forward.1} parent=1 // pred_fallthru
      _
    %v49 = vld [vmem:[%s0] sm:$0xff]
    %v50 = vld [vmem:[%s0 + $0x8] sm:$0xff]
    %v51 = vpack.c.bf16 %v50, %v49
    %v52 = vld [vmem:[%s1] sm:$0xf]
    %v53 = vld [vmem:[%s2] sm:$0x1]
    %v55 = vperm.slane %v53, 0
    %vm57 = vcmask 64512
    %v59 = vsel %vm57, %v51, 0
    %vm61 = vcmask 1043456
    %v63 = vsel %vm61, %v52, 0
    %65 = vmatpush.bf16.msra.mxu0 0
    %66 = vmatpush.bf16.msra.mxu0 0
    %67 = vmatpush.bf16.msra.mxu0 0
    %68 = vmatpush.bf16.msra.mxu0 0
    %69 = vmatpush.bf16.msra.mxu0 0
    %70 = vmatpush.bf16.msra.mxu0 0
    %71 = vmatpush.bf16.msra.mxu0 0
    %72 = vmatpush.bf16.msra.mxu0 %v63
    %73 = vmatmul.bf16.gmra.mxu0 %v59
    %v74 = vpop.f32.mrf.mxu0
    %v75 = vadd.f32 %v55, %v74
    %v76 = vpop.f32.mrf.mxu0
    %v77 = vadd.f32 %v55, %v76
    %78 = vdwg.mxu0
    %v79 = vmax.f32 %v75, 0.0
    %v80 = vmax.f32 %v77, 0.0
    %v81 = vpack.c.bf16 %v80, %v79
    %v82 = vld [vmem:[%s3] sm:$0xff]
    %v83 = vld [vmem:[%s3 + $0x8] sm:$0xff]
    %v84 = vld [vmem:[%s3 + $0x10] sm:$0xff]
    %v85 = vld [vmem:[%s3 + $0x18] sm:$0xff]
    %v86 = vld [vmem:[%s3 + $0x20] sm:$0xff]
    %v87 = vld [vmem:[%s3 + $0x28] sm:$0xff]
    %v88 = vld [vmem:[%s3 + $0x30] sm:$0xff]
    %v89 = vld [vmem:[%s3 + $0x38] sm:$0xff]
    %v90 = vld [vmem:[%s3 + $0x40] sm:$0xff]
    %v91 = vld [vmem:[%s3 + $0x48] sm:$0xff]
    %v92 = vld [vmem:[%s3 + $0x50] sm:$0xff]
    %v93 = vld [vmem:[%s3 + $0x58] sm:$0xff]
    %v94 = vld [vmem:[%s3 + $0x60] sm:$0xff]
    %v95 = vld [vmem:[%s3 + $0x68] sm:$0xff]
    %v96 = vld [vmem:[%s3 + $0x70] sm:$0xff]
    %v97 = vld [vmem:[%s3 + $0x78] sm:$0xff]
    %v98 = vld [vmem:[%s4] sm:$0x3]
    %v100 = vperm.slane %v98, 0
    %v101 = vperm.slane %v98, 1
    %v120 = vunpack.c.l.b16 %v82
    %v121 = vunpack.c.h.b16 %v82
    %v122 = vunpack.c.l.b16 %v83
    %v123 = vunpack.c.h.b16 %v83
    %v124 = vunpack.c.l.b16 %v84
    %v125 = vunpack.c.h.b16 %v84
    %v126 = vunpack.c.l.b16 %v85
    %v127 = vunpack.c.h.b16 %v85
    %v128 = vunpack.c.l.b16 %v86
    %v129 = vunpack.c.h.b16 %v86
    %v130 = vunpack.c.l.b16 %v87
    %v131 = vunpack.c.h.b16 %v87
    %v132 = vunpack.c.l.b16 %v88
    %v133 = vunpack.c.h.b16 %v88
    %v134 = vunpack.c.l.b16 %v89
    %v135 = vunpack.c.h.b16 %v89
    %v136 = vunpack.c.l.b16 %v90
    %v137 = vunpack.c.h.b16 %v90
    %v138 = vunpack.c.l.b16 %v91
    %v139 = vunpack.c.h.b16 %v91
    %v140 = vunpack.c.l.b16 %v92
    %v141 = vunpack.c.h.b16 %v92
    %v142 = vunpack.c.l.b16 %v93
    %v143 = vunpack.c.h.b16 %v93
    %v144 = vunpack.c.l.b16 %v94
    %v145 = vunpack.c.h.b16 %v94
    %v146 = vunpack.c.l.b16 %v95
    %v147 = vunpack.c.h.b16 %v95
    %v148 = vunpack.c.l.b16 %v96
    %v149 = vunpack.c.h.b16 %v96
    %v150 = vunpack.c.l.b16 %v97
    %v151 = vunpack.c.h.b16 %v97
    %v152 = vpack.c.b16 %v122, %v120
    %v153 = vpack.c.b16 %v123, %v121
    %v154 = vpack.c.b16 %v126, %v124
    %v155 = vpack.c.b16 %v127, %v125
    %v156 = vpack.c.b16 %v130, %v128
    %v157 = vpack.c.b16 %v131, %v129
    %v158 = vpack.c.b16 %v134, %v132
    %v159 = vpack.c.b16 %v135, %v133
    %v160 = vpack.c.b16 %v138, %v136
    %v161 = vpack.c.b16 %v139, %v137
    %v162 = vpack.c.b16 %v142, %v140
    %v163 = vpack.c.b16 %v143, %v141
    %v164 = vpack.c.b16 %v146, %v144
    %v165 = vpack.c.b16 %v147, %v145
    %v166 = vpack.c.b16 %v150, %v148
    %v167 = vpack.c.b16 %v151, %v149
    %184 = vmatpush.bf16.msra.mxu0 %v166
    %185 = vmatpush.bf16.msra.mxu0 %v164
    %186 = vmatpush.bf16.msra.mxu0 %v162
    %187 = vmatpush.bf16.msra.mxu0 %v160
    %188 = vmatpush.bf16.msra.mxu0 %v158
    %189 = vmatpush.bf16.msra.mxu0 %v156
    %190 = vmatpush.bf16.msra.mxu0 %v154
    %191 = vmatpush.bf16.msra.mxu0 %v152
    %192 = vmatmul.bf16.gmra.mxu0 %v81
    %v193 = vpop.f32.mrf.mxu0
    %v194 = vadd.f32 %v100, %v193
    %v195 = vpop.f32.mrf.mxu0
    %v196 = vadd.f32 %v100, %v195
    %197 = vdwg.mxu0
    %198 = vmatpush.bf16.msra.mxu0 %v167
    %199 = vmatpush.bf16.msra.mxu0 %v165
    %200 = vmatpush.bf16.msra.mxu0 %v163
    %201 = vmatpush.bf16.msra.mxu0 %v161
    %202 = vmatpush.bf16.msra.mxu0 %v159
    %203 = vmatpush.bf16.msra.mxu0 %v157
    %204 = vmatpush.bf16.msra.mxu0 %v155
    %205 = vmatpush.bf16.msra.mxu0 %v153
    %206 = vmatmul.bf16.gmra.mxu0 %v81
    %v207 = vpop.f32.mrf.mxu0
    %v208 = vadd.f32 %v101, %v207
    %v209 = vpop.f32.mrf.mxu0
    %v210 = vadd.f32 %v101, %v209
    %211 = vdwg.mxu0
    %v212 = vmax.f32 %v194, 0.0
    %v213 = vmax.f32 %v208, 0.0
    %v214 = vmax.f32 %v196, 0.0
    %v215 = vmax.f32 %v210, 0.0
    %v216 = vpack.c.bf16 %v214, %v212
    %v217 = vpack.c.bf16 %v215, %v213
    %v218 = vld [vmem:[#allocation2] sm:$0xff]
    %v219 = vld [vmem:[#allocation2 + $0x8] sm:$0xff]
    %v220 = vld [vmem:[#allocation2 + $0x10] sm:$0xff]
    %v221 = vld [vmem:[#allocation2 + $0x18] sm:$0xff]
    %v222 = vld [vmem:[#allocation2 + $0x20] sm:$0xff]
    %v223 = vld [vmem:[#allocation2 + $0x28] sm:$0xff]
    %v224 = vld [vmem:[#allocation2 + $0x30] sm:$0xff]
    %v225 = vld [vmem:[#allocation2 + $0x38] sm:$0xff]
    %v226 = vld [vmem:[#allocation2 + $0x40] sm:$0xff]
    %v227 = vld [vmem:[#allocation2 + $0x48] sm:$0xff]
    %v228 = vld [vmem:[#allocation2 + $0x50] sm:$0xff]
    %v229 = vld [vmem:[#allocation2 + $0x58] sm:$0xff]
    %v230 = vld [vmem:[#allocation2 + $0x60] sm:$0xff]
    %v231 = vld [vmem:[#allocation2 + $0x68] sm:$0xff]
    %v232 = vld [vmem:[#allocation2 + $0x70] sm:$0xff]
    %v233 = vld [vmem:[#allocation2 + $0x78] sm:$0xff]
    %v234 = vld [vmem:[#allocation2 + $0x80] sm:$0xff]
    %v235 = vld [vmem:[#allocation2 + $0x88] sm:$0xff]
    %v236 = vld [vmem:[#allocation2 + $0x90] sm:$0xff]
    %v237 = vld [vmem:[#allocation2 + $0x98] sm:$0xff]
    %v238 = vld [vmem:[#allocation2 + $0xa0] sm:$0xff]
    %v239 = vld [vmem:[#allocation2 + $0xa8] sm:$0xff]
    %v240 = vld [vmem:[#allocation2 + $0xb0] sm:$0xff]
    %v241 = vld [vmem:[#allocation2 + $0xb8] sm:$0xff]
    %v242 = vld [vmem:[#allocation2 + $0xc0] sm:$0xff]
    %v243 = vld [vmem:[#allocation2 + $0xc8] sm:$0xff]
    %v244 = vld [vmem:[#allocation2 + $0xd0] sm:$0xff]
    %v245 = vld [vmem:[#allocation2 + $0xd8] sm:$0xff]
    %v246 = vld [vmem:[#allocation2 + $0xe0] sm:$0xff]
    %v247 = vld [vmem:[#allocation2 + $0xe8] sm:$0xff]
    %v248 = vld [vmem:[#allocation2 + $0xf0] sm:$0xff]
    %v249 = vld [vmem:[#allocation2 + $0xf8] sm:$0xff]
    %v250 = vld [vmem:[%s6] sm:$0x3]
    %v252 = vperm.slane %v250, 0
    %v253 = vperm.slane %v250, 1
    %v288 = vunpack.c.l.b16 %v218
    %v289 = vunpack.c.h.b16 %v218
    %v290 = vunpack.c.l.b16 %v219
    %v291 = vunpack.c.h.b16 %v219
    %v292 = vunpack.c.l.b16 %v220
    %v293 = vunpack.c.h.b16 %v220
    %v294 = vunpack.c.l.b16 %v221
    %v295 = vunpack.c.h.b16 %v221
    %v296 = vunpack.c.l.b16 %v222
    %v297 = vunpack.c.h.b16 %v222
    %v298 = vunpack.c.l.b16 %v223
    %v299 = vunpack.c.h.b16 %v223
    %v300 = vunpack.c.l.b16 %v224
    %v301 = vunpack.c.h.b16 %v224
    %v302 = vunpack.c.l.b16 %v225
    %v303 = vunpack.c.h.b16 %v225
    %v304 = vunpack.c.l.b16 %v226
    %v305 = vunpack.c.h.b16 %v226
    %v306 = vunpack.c.l.b16 %v227
    %v307 = vunpack.c.h.b16 %v227
    %v308 = vunpack.c.l.b16 %v228
    %v309 = vunpack.c.h.b16 %v228
    %v310 = vunpack.c.l.b16 %v229
    %v311 = vunpack.c.h.b16 %v229
    %v312 = vunpack.c.l.b16 %v230
    %v313 = vunpack.c.h.b16 %v230
    %v314 = vunpack.c.l.b16 %v231
    %v315 = vunpack.c.h.b16 %v231
    %v316 = vunpack.c.l.b16 %v232
    %v317 = vunpack.c.h.b16 %v232
    %v318 = vunpack.c.l.b16 %v233
    %v319 = vunpack.c.h.b16 %v233
    %v320 = vunpack.c.l.b16 %v234
    %v321 = vunpack.c.h.b16 %v234
    %v322 = vunpack.c.l.b16 %v235
    %v323 = vunpack.c.h.b16 %v235
    %v324 = vunpack.c.l.b16 %v236
    %v325 = vunpack.c.h.b16 %v236
    %v326 = vunpack.c.l.b16 %v237
    %v327 = vunpack.c.h.b16 %v237
    %v328 = vunpack.c.l.b16 %v238
    %v329 = vunpack.c.h.b16 %v238
    %v330 = vunpack.c.l.b16 %v239
    %v331 = vunpack.c.h.b16 %v239
    %v332 = vunpack.c.l.b16 %v240
    %v333 = vunpack.c.h.b16 %v240
    %v334 = vunpack.c.l.b16 %v241
    %v335 = vunpack.c.h.b16 %v241
    %v336 = vunpack.c.l.b16 %v242
    %v337 = vunpack.c.h.b16 %v242
    %v338 = vunpack.c.l.b16 %v243
    %v339 = vunpack.c.h.b16 %v243
    %v340 = vunpack.c.l.b16 %v244
    %v341 = vunpack.c.h.b16 %v244
    %v342 = vunpack.c.l.b16 %v245
    %v343 = vunpack.c.h.b16 %v245
    %v344 = vunpack.c.l.b16 %v246
    %v345 = vunpack.c.h.b16 %v246
    %v346 = vunpack.c.l.b16 %v247
    %v347 = vunpack.c.h.b16 %v247
    %v348 = vunpack.c.l.b16 %v248
    %v349 = vunpack.c.h.b16 %v248
    %v350 = vunpack.c.l.b16 %v249
    %v351 = vunpack.c.h.b16 %v249
    %v352 = vpack.c.b16 %v290, %v288
    %v353 = vpack.c.b16 %v291, %v289
    %v354 = vpack.c.b16 %v294, %v292
    %v355 = vpack.c.b16 %v295, %v293
    %v356 = vpack.c.b16 %v298, %v296
    %v357 = vpack.c.b16 %v299, %v297
    %v358 = vpack.c.b16 %v302, %v300
    %v359 = vpack.c.b16 %v303, %v301
    %v360 = vpack.c.b16 %v306, %v304
    %v361 = vpack.c.b16 %v307, %v305
    %v362 = vpack.c.b16 %v310, %v308
    %v363 = vpack.c.b16 %v311, %v309
    %v364 = vpack.c.b16 %v314, %v312
    %v365 = vpack.c.b16 %v315, %v313
    %v366 = vpack.c.b16 %v318, %v316
    %v367 = vpack.c.b16 %v319, %v317
    %v368 = vpack.c.b16 %v322, %v320
    %v369 = vpack.c.b16 %v323, %v321
    %v370 = vpack.c.b16 %v326, %v324
    %v371 = vpack.c.b16 %v327, %v325
    %v372 = vpack.c.b16 %v330, %v328
    %v373 = vpack.c.b16 %v331, %v329
    %v374 = vpack.c.b16 %v334, %v332
    %v375 = vpack.c.b16 %v335, %v333
    %v376 = vpack.c.b16 %v338, %v336
    %v377 = vpack.c.b16 %v339, %v337
    %v378 = vpack.c.b16 %v342, %v340
    %v379 = vpack.c.b16 %v343, %v341
    %v380 = vpack.c.b16 %v346, %v344
    %v381 = vpack.c.b16 %v347, %v345
    %v382 = vpack.c.b16 %v350, %v348
    %v383 = vpack.c.b16 %v351, %v349
    %416 = vmatpush.bf16.msra.mxu0 %v366
    %417 = vmatpush.bf16.msra.mxu0 %v364
    %418 = vmatpush.bf16.msra.mxu0 %v362
    %419 = vmatpush.bf16.msra.mxu0 %v360
    %420 = vmatpush.bf16.msra.mxu0 %v358
    %421 = vmatpush.bf16.msra.mxu0 %v356
    %422 = vmatpush.bf16.msra.mxu0 %v354
    %423 = vmatpush.bf16.msra.mxu0 %v352
    %424 = vmatmul.bf16.gmra.mxu0 %v216
    %v425 = vpop.f32.mrf.mxu0
    %v426 = vadd.f32 %v252, %v425
    %v427 = vpop.f32.mrf.mxu0
    %v428 = vadd.f32 %v252, %v427
    %429 = vdwg.mxu0
    %430 = vmatpush.bf16.msra.mxu0 %v382
    %431 = vmatpush.bf16.msra.mxu0 %v380
    %432 = vmatpush.bf16.msra.mxu0 %v378
    %433 = vmatpush.bf16.msra.mxu0 %v376
    %434 = vmatpush.bf16.msra.mxu0 %v374
    %435 = vmatpush.bf16.msra.mxu0 %v372
    %436 = vmatpush.bf16.msra.mxu0 %v370
    %437 = vmatpush.bf16.msra.mxu0 %v368
    %438 = vmatmul.bf16.gmra.mxu0 %v217
    %v439 = vpop.f32.mrf.mxu0
    %v440 = vadd.f32 %v426, %v439
    %v441 = vpop.f32.mrf.mxu0
    %v442 = vadd.f32 %v428, %v441
    %443 = vdwg.mxu0
    %444 = vmatpush.bf16.msra.mxu0 %v367
    %445 = vmatpush.bf16.msra.mxu0 %v365
    %446 = vmatpush.bf16.msra.mxu0 %v363
    %447 = vmatpush.bf16.msra.mxu0 %v361
    %448 = vmatpush.bf16.msra.mxu0 %v359
    %449 = vmatpush.bf16.msra.mxu0 %v357
    %450 = vmatpush.bf16.msra.mxu0 %v355
    %451 = vmatpush.bf16.msra.mxu0 %v353
    %452 = vmatmul.bf16.gmra.mxu0 %v216
    %v453 = vpop.f32.mrf.mxu0
    %v454 = vadd.f32 %v253, %v453
    %v455 = vpop.f32.mrf.mxu0
    %v456 = vadd.f32 %v253, %v455
    %457 = vdwg.mxu0
    %458 = vmatpush.bf16.msra.mxu0 %v383
    %459 = vmatpush.bf16.msra.mxu0 %v381
    %460 = vmatpush.bf16.msra.mxu0 %v379
    %461 = vmatpush.bf16.msra.mxu0 %v377
    %462 = vmatpush.bf16.msra.mxu0 %v375
    %463 = vmatpush.bf16.msra.mxu0 %v373
    %464 = vmatpush.bf16.msra.mxu0 %v371
    %465 = vmatpush.bf16.msra.mxu0 %v369
    %466 = vmatmul.bf16.gmra.mxu0 %v217
    %v467 = vpop.f32.mrf.mxu0
    %v468 = vadd.f32 %v454, %v467
    %v469 = vpop.f32.mrf.mxu0
    %v470 = vadd.f32 %v456, %v469
    %471 = vdwg.mxu0
    %v472 = vmax.f32 %v440, 0.0
    %v473 = vmax.f32 %v468, 0.0
    %v474 = vmax.f32 %v442, 0.0
    %v475 = vmax.f32 %v470, 0.0
    %v476 = vpack.c.bf16 %v474, %v472
    %v477 = vpack.c.bf16 %v475, %v473
    %v478 = vld [vmem:[%s7] sm:$0xf]
    %v479 = vld [vmem:[%s7 + $0x4] sm:$0xf]
    %v480 = vld [vmem:[%s7 + $0x8] sm:$0xf]
    %v481 = vld [vmem:[%s7 + $0xc] sm:$0xf]
    %v482 = vld [vmem:[%s7 + $0x10] sm:$0xf]
    %v483 = vld [vmem:[%s7 + $0x14] sm:$0xf]
    %v484 = vld [vmem:[%s7 + $0x18] sm:$0xf]
    %v485 = vld [vmem:[%s7 + $0x1c] sm:$0xf]
    %v486 = vld [vmem:[%s7 + $0x20] sm:$0xf]
    %v487 = vld [vmem:[%s7 + $0x24] sm:$0xf]
    %v488 = vld [vmem:[%s7 + $0x28] sm:$0xf]
    %v489 = vld [vmem:[%s7 + $0x2c] sm:$0xf]
    %v490 = vld [vmem:[%s7 + $0x30] sm:$0xf]
    %v491 = vld [vmem:[%s7 + $0x34] sm:$0xf]
    %v492 = vld [vmem:[%s7 + $0x38] sm:$0xf]
    %v493 = vld [vmem:[%s7 + $0x3c] sm:$0xf]
    %v494 = vld [vmem:[%s7 + $0x40] sm:$0xf]
    %v495 = vld [vmem:[%s7 + $0x44] sm:$0xf]
    %v496 = vld [vmem:[%s7 + $0x48] sm:$0xf]
    %v497 = vld [vmem:[%s7 + $0x4c] sm:$0xf]
    %v498 = vld [vmem:[%s7 + $0x50] sm:$0xf]
    %v499 = vld [vmem:[%s7 + $0x54] sm:$0xf]
    %v500 = vld [vmem:[%s7 + $0x58] sm:$0xf]
    %v501 = vld [vmem:[%s7 + $0x5c] sm:$0xf]
    %v502 = vld [vmem:[%s7 + $0x60] sm:$0xf]
    %v503 = vld [vmem:[%s7 + $0x64] sm:$0xf]
    %v504 = vld [vmem:[%s7 + $0x68] sm:$0xf]
    %v505 = vld [vmem:[%s7 + $0x6c] sm:$0xf]
    %v506 = vld [vmem:[%s7 + $0x70] sm:$0xf]
    %v507 = vld [vmem:[%s7 + $0x74] sm:$0xf]
    %v508 = vld [vmem:[%s7 + $0x78] sm:$0xf]
    %v509 = vld [vmem:[%s7 + $0x7c] sm:$0xf]
    %v510 = vld [vmem:[%s8] sm:$0x1]
    %v512 = vperm.slane %v510, 0
    %v546 = vunpack.c.l.b16 %v478
    %v547 = vunpack.c.l.b16 %v479
    %v548 = vunpack.c.l.b16 %v480
    %v549 = vunpack.c.l.b16 %v481
    %v550 = vunpack.c.l.b16 %v482
    %v551 = vunpack.c.l.b16 %v483
    %v552 = vunpack.c.l.b16 %v484
    %v553 = vunpack.c.l.b16 %v485
    %v554 = vunpack.c.l.b16 %v486
    %v555 = vunpack.c.l.b16 %v487
    %v556 = vunpack.c.l.b16 %v488
    %v557 = vunpack.c.l.b16 %v489
    %v558 = vunpack.c.l.b16 %v490
    %v559 = vunpack.c.l.b16 %v491
    %v560 = vunpack.c.l.b16 %v492
    %v561 = vunpack.c.l.b16 %v493
    %v562 = vunpack.c.l.b16 %v494
    %v563 = vunpack.c.l.b16 %v495
    %v564 = vunpack.c.l.b16 %v496
    %v565 = vunpack.c.l.b16 %v497
    %v566 = vunpack.c.l.b16 %v498
    %v567 = vunpack.c.l.b16 %v499
    %v568 = vunpack.c.l.b16 %v500
    %v569 = vunpack.c.l.b16 %v501
    %v570 = vunpack.c.l.b16 %v502
    %v571 = vunpack.c.l.b16 %v503
    %v572 = vunpack.c.l.b16 %v504
    %v573 = vunpack.c.l.b16 %v505
    %v574 = vunpack.c.l.b16 %v506
    %v575 = vunpack.c.l.b16 %v507
    %v576 = vunpack.c.l.b16 %v508
    %v577 = vunpack.c.l.b16 %v509
    %v578 = vpack.c.b16 %v547, %v546
    %v579 = vpack.c.b16 %v549, %v548
    %v580 = vpack.c.b16 %v551, %v550
    %v581 = vpack.c.b16 %v553, %v552
    %v582 = vpack.c.b16 %v555, %v554
    %v583 = vpack.c.b16 %v557, %v556
    %v584 = vpack.c.b16 %v559, %v558
    %v585 = vpack.c.b16 %v561, %v560
    %v586 = vpack.c.b16 %v563, %v562
    %v587 = vpack.c.b16 %v565, %v564
    %v588 = vpack.c.b16 %v567, %v566
    %v589 = vpack.c.b16 %v569, %v568
    %v590 = vpack.c.b16 %v571, %v570
    %v591 = vpack.c.b16 %v573, %v572
    %v592 = vpack.c.b16 %v575, %v574
    %v593 = vpack.c.b16 %v577, %v576
    %610 = vmatpush.bf16.msra.mxu0 %v585
    %611 = vmatpush.bf16.msra.mxu0 %v584
    %612 = vmatpush.bf16.msra.mxu0 %v583
    %613 = vmatpush.bf16.msra.mxu0 %v582
    %614 = vmatpush.bf16.msra.mxu0 %v581
    %615 = vmatpush.bf16.msra.mxu0 %v580
    %616 = vmatpush.bf16.msra.mxu0 %v579
    %617 = vmatpush.bf16.msra.mxu0 %v578
    %618 = vmatmul.bf16.gmra.mxu0 %v476
    %v619 = vpop.f32.mrf.mxu0
    %v620 = vadd.f32 %v512, %v619
    %v621 = vpop.f32.mrf.mxu0
    %v622 = vadd.f32 %v512, %v621
    %623 = vdwg.mxu0
    %624 = vmatpush.bf16.msra.mxu0 %v593
    %625 = vmatpush.bf16.msra.mxu0 %v592
    %626 = vmatpush.bf16.msra.mxu0 %v591
    %627 = vmatpush.bf16.msra.mxu0 %v590
    %628 = vmatpush.bf16.msra.mxu0 %v589
    %629 = vmatpush.bf16.msra.mxu0 %v588
    %630 = vmatpush.bf16.msra.mxu0 %v587
    %631 = vmatpush.bf16.msra.mxu0 %v586
    %632 = vmatmul.bf16.gmra.mxu0 %v477
    %v633 = vpop.f32.mrf.mxu0
    %v634 = vadd.f32 %v620, %v633
    %v635 = vpop.f32.mrf.mxu0
    %v636 = vadd.f32 %v622, %v635
    %637 = vdwg.mxu0
    %638 = vst.msk [vmem:[%s9] sm:$0xff] %vm57, %v634
    %639 = vst.msk [vmem:[%s9 + $0x8] sm:$0xff] %vm57, %v636
    // Predicated region
    $region42: #{qnet_forward.1} parent=1 // pred_check
      _
    $region43: #{qnet_forward.1} parent=1 // pred_check_branch
      %641 = sbr.rel (0) target = $region45
    $region44: #{qnet_forward.1} parent=1 // pred_region
      _
    $region45: #{qnet_forward.1} parent=1 // pred_fallthru
      _
    // Predicated region
    $region46: #{qnet_forward.1} parent=1 // pred_check
      _
    $region47: #{qnet_forward.1} parent=1 // pred_check_branch
      %643 = sbr.rel (0) target = $region49
    $region48: #{qnet_forward.1} parent=1 // pred_region
      _
    $region49: #{qnet_forward.1} parent=1 // pred_fallthru
      _
    %644 = vsyncpa [#allocation3], 1

</llo_original>
